<compile_context>
chip_gen: v5e
topology: v5e:2x2
jax: 0.10.0
libtpu: 0.0.40
codegen_flags: <defaults>
</compile_context>

<pallas_src>
import math

import jax
import jax.numpy as jnp
from jax import lax
from jax.experimental import pallas as pl
from jax.experimental.pallas import tpu as pltpu

NEG_INF = -1e30  # finite "minus infinity" (avoids inf-inf NaNs in the online softmax)


def _round_up(x, m):
    return ((x + m - 1) // m) * m


def _pick_group(bh, want):
    """Largest divisor of bh that is <= want, keeping >= 2 groups when possible."""
    h = max(1, min(want, bh))
    while bh % h != 0:
        h -= 1
    while h > 1 and bh // h < 2:
        h -= 1
        while bh % h != 0:
            h -= 1
    return h


# ---------------------------------------------------------------- kernel ----

def _flash_causal_kernel(qt_ref, kt_ref,            # scalar-prefetch (SMEM) tables
                         q_ref, k_ref, v_ref,       # bf16 (hpb, t, D) blocks
                         o_ref,                     # f32  (hpb, t, D) block
                         m_sc, l_sc, acc_sc):       # VMEM scratch accumulators
    p = pl.program_id(1)
    qi = qt_ref[p]
    ki = kt_ref[p]

    @pl.when(ki == 0)
    def _init():
        m_sc[...] = jnp.full_like(m_sc, NEG_INF)
        l_sc[...] = jnp.zeros_like(l_sc)
        acc_sc[...] = jnp.zeros_like(acc_sc)

    # Q was pre-scaled by 1/sqrt(D) and cast to bf16 in the wrapper.
    q = q_ref[...]                                        # (hpb, tq, D) bf16
    k = k_ref[...]                                        # (hpb, tk, D) bf16
    v = v_ref[...]                                        # (hpb, tk, D) bf16

    # scores: contract the last dims directly (no materialized transpose), f32 acc.
    s = jnp.einsum("hqd,hkd->hqk", q, k,
                   preferred_element_type=jnp.float32)    # (hpb, tq, tk) f32

    def update(scores):
        m_prev = m_sc[...]                                # (hpb, tq, 1)
        m_new = jnp.maximum(m_prev, jnp.max(scores, axis=-1, keepdims=True))
        alpha = jnp.exp(m_prev - m_new)
        prob = jnp.exp(scores - m_new)                    # f32 (safe on v5e)
        l_sc[...] = alpha * l_sc[...] + jnp.sum(prob, axis=-1, keepdims=True)
        pv = jnp.einsum("hqk,hkd->hqd", prob.astype(v.dtype), v,
                        preferred_element_type=jnp.float32)
        acc_sc[...] = alpha * acc_sc[...] + pv
        m_sc[...] = m_new

    # Interior block (ki < qi): fully inside the causal region, no mask needed.
    @pl.when(ki < qi)
    def _interior():
        update(s)

    # Diagonal block (ki == qi): triangular mask; it is also the last kv block
    # for this q tile, so finalize (normalize + store) right after the update.
    @pl.when(ki == qi)
    def _diag_and_finalize():
        row = lax.broadcasted_iota(jnp.int32, s.shape, 1)
        col = lax.broadcasted_iota(jnp.int32, s.shape, 2)
        update(jnp.where(col <= row, s, NEG_INF))
        inv_l = pl.reciprocal(l_sc[...], approx=True)     # EUP slot, ~free
        o_ref[...] = (acc_sc[...] * inv_l).astype(o_ref.dtype)


# -------------------------------------------------------------- wrappers ----

def _flash_call(q, k, v, *, t, hpb):
    # q/k/v: (BH, S_pad, D) bf16 (q pre-scaled)
    BH, S_pad, D = q.shape
    nq = S_pad // t

    # Flattened lower-triangular (qi, ki) pairs -> only useful grid steps exist.
    pairs = [(qi, ki) for qi in range(nq) for ki in range(qi + 1)]
    qtab = jnp.asarray([p[0] for p in pairs], dtype=jnp.int32)
    ktab = jnp.asarray([p[1] for p in pairs], dtype=jnp.int32)
    npairs = len(pairs)

    return pl.pallas_call(
        _flash_causal_kernel,
        out_shape=jax.ShapeDtypeStruct((BH, S_pad, D), jnp.float32),
        grid_spec=pltpu.PrefetchScalarGridSpec(
            num_scalar_prefetch=2,
            grid=(BH // hpb, npairs),
            in_specs=[
                pl.BlockSpec((hpb, t, D), lambda g, p, qt, kt: (g, qt[p], 0)),
                pl.BlockSpec((hpb, t, D), lambda g, p, qt, kt: (g, kt[p], 0)),
                pl.BlockSpec((hpb, t, D), lambda g, p, qt, kt: (g, kt[p], 0)),
            ],
            out_specs=pl.BlockSpec((hpb, t, D), lambda g, p, qt, kt: (g, qt[p], 0)),
            scratch_shapes=[
                pltpu.VMEM((hpb, t, 1), jnp.float32),   # running max  m
                pltpu.VMEM((hpb, t, 1), jnp.float32),   # running sum  l
                pltpu.VMEM((hpb, t, D), jnp.float32),   # output accumulator
            ],
        ),
        compiler_params=pltpu.CompilerParams(
            dimension_semantics=("parallel", "arbitrary"),
        ),
    )(qtab, ktab, q, k, v)


def core_attention(query_layer, key_layer, value_layer, *, tile=256, heads_per_block=2):
    """_CoreAttention.forward: causal self-attention, inputs [S, B, NH, D] -> [S, B, NH*D]."""
    S, B, NH, D = query_layer.shape
    BH = B * NH
    scale = 1.0 / math.sqrt(D)

    hpb = _pick_group(BH, heads_per_block)

    # q/kv tile (tq == tk, required by the diagonal-only masking); pad S to a
    # multiple of the tile (padded keys are masked by the diagonal-block mask,
    # padded query rows are sliced off below).
    tile = _round_up(max(tile, 8), 8)
    t = min(tile, _round_up(S, 8))
    S_pad = _round_up(S, t)

    def to_bh(x, s=None):  # 's b h d -> (b h) s d', fused scale + bf16 cast + pad
        if s is not None:
            x = x * s
        x = x.astype(jnp.bfloat16)
        x = jnp.transpose(x, (1, 2, 0, 3)).reshape(BH, S, D)
        if S_pad != S:
            x = jnp.pad(x, ((0, 0), (0, S_pad - S), (0, 0)))
        return x

    out = _flash_call(to_bh(query_layer, scale), to_bh(key_layer), to_bh(value_layer),
                      t=t, hpb=hpb)                       # (BH, S_pad, D) f32
    out = out[:, :S, :]
    # '(b h) s d -> s b (h d)'  (matches einops '(s b) h d -> s b (h d)' of the module)
    out = out.reshape(B, NH, S, D).transpose(2, 0, 1, 3).reshape(S, B, NH * D)
    return out


# ------------------------------------------------------------------ main ----

if __name__ == "__main__":
    key = jax.random.PRNGKey(0)
    kq, kk, kv = jax.random.split(key, 3)

    S, B, NH, D = 8, 2, 4, 64  # seq, batch, heads, head_dim (hidden = 256)
    q = jax.random.normal(kq, (S, B, NH, D), jnp.float32)
    k = jax.random.normal(kk, (S, B, NH, D), jnp.float32)
    v = jax.random.normal(kv, (S, B, NH, D), jnp.float32)

    out = jax.jit(core_attention)(q, k, v)
    out = jax.block_until_ready(out)
    assert out.shape == (S, B, NH * D)
    assert bool(jnp.all(jnp.isfinite(out)))

    # pure-JAX reference (f32 causal softmax attention)
    def ref(q, k, v):
        qb = jnp.transpose(q, (1, 2, 0, 3))
        kb = jnp.transpose(k, (1, 2, 0, 3))
        vb = jnp.transpose(v, (1, 2, 0, 3))
        s = jnp.einsum("bhqd,bhkd->bhqk", qb, kb) / jnp.sqrt(jnp.float32(D))
        mask = jnp.tril(jnp.ones((S, S), bool))
        s = jnp.where(mask, s, -jnp.inf)
        p = jax.nn.softmax(s, axis=-1)
        o = jnp.einsum("bhqk,bhkd->bhqd", p, vb)
        return jnp.transpose(o, (2, 0, 1, 3)).reshape(S, B, NH * D)

    r = ref(q, k, v)
    assert bool(jnp.allclose(out, r, atol=5e-2, rtol=5e-2)), float(jnp.max(jnp.abs(out - r)))
    print("KERNEL_OK")
</pallas_src>

<mosaic_0001>
module attributes {stable_mosaic.version = 11 : i64} {
  func.func @_flash_causal_kernel(%arg0: i32, %arg1: i32, %arg2: memref<1xi32, #tpu.memory_space<smem>>, %arg3: memref<1xi32, #tpu.memory_space<smem>>, %arg4: memref<2x8x64xbf16, #tpu.memory_space<vmem>>, %arg5: memref<2x8x64xbf16, #tpu.memory_space<vmem>>, %arg6: memref<2x8x64xbf16, #tpu.memory_space<vmem>>, %arg7: memref<2x8x64xf32, #tpu.memory_space<vmem>>, %arg8: memref<2x8x1xf32, #tpu.memory_space<vmem>>, %arg9: memref<2x8x1xf32, #tpu.memory_space<vmem>>, %arg10: memref<2x8x64xf32, #tpu.memory_space<vmem>>) attributes {dimension_semantics = [#tpu.dimension_semantics<parallel>, #tpu.dimension_semantics<arbitrary>], iteration_bounds = array<i64: 4, 1>, scalar_prefetch = 2 : i64, scratch_operands = 3 : i64, tpu.core_type = #tpu.core_type<tc>, window_params = [{transform_indices = @transform_0, window_bounds = array<i64: 2, 8, 64>}, {transform_indices = @transform_1, window_bounds = array<i64: 2, 8, 64>}, {transform_indices = @transform_2, window_bounds = array<i64: 2, 8, 64>}, {transform_indices = @transform_3, window_bounds = array<i64: 2, 8, 64>}]} {
    %0 = arith.index_cast %arg1 : i32 to index
    %1 = memref.load %arg2[%0] : memref<1xi32, #tpu.memory_space<smem>>
    %2 = arith.index_cast %arg1 : i32 to index
    %3 = memref.load %arg3[%2] : memref<1xi32, #tpu.memory_space<smem>>
    %c0_i32 = arith.constant 0 : i32
    %4 = arith.cmpi eq, %3, %c0_i32 : i32
    %5 = arith.extui %4 : i1 to i32
    %c0_i32_0 = arith.constant 0 : i32
    %6 = arith.cmpi ne, %5, %c0_i32_0 : i32
    scf.if %6 {
      %cst_11 = arith.constant -1.000000e+30 : f32
      %17 = vector.broadcast %cst_11 : f32 to vector<2x8x1xf32>
      %c0_12 = arith.constant 0 : index
      %c0_13 = arith.constant 0 : index
      %c0_14 = arith.constant 0 : index
      %18 = vector.load %arg8[%c0_12, %c0_13, %c0_14] : memref<2x8x1xf32, #tpu.memory_space<vmem>>, vector<2x8x1xf32>
      tpu.vector_store %arg8[%c0_12, %c0_13, %c0_14], %17 {strides = array<i32>} : memref<2x8x1xf32, #tpu.memory_space<vmem>>, vector<2x8x1xf32>,
      %cst_15 = arith.constant 0.000000e+00 : f32
      %19 = vector.broadcast %cst_15 : f32 to vector<2x8x1xf32>
      %c0_16 = arith.constant 0 : index
      %c0_17 = arith.constant 0 : index
      %c0_18 = arith.constant 0 : index
      %20 = vector.load %arg9[%c0_16, %c0_17, %c0_18] : memref<2x8x1xf32, #tpu.memory_space<vmem>>, vector<2x8x1xf32>
      tpu.vector_store %arg9[%c0_16, %c0_17, %c0_18], %19 {strides = array<i32>} : memref<2x8x1xf32, #tpu.memory_space<vmem>>, vector<2x8x1xf32>,
      %cst_19 = arith.constant 0.000000e+00 : f32
      %21 = vector.broadcast %cst_19 : f32 to vector<2x8x64xf32>
      %c0_20 = arith.constant 0 : index
      %c0_21 = arith.constant 0 : index
      %c0_22 = arith.constant 0 : index
      %22 = vector.load %arg10[%c0_20, %c0_21, %c0_22] : memref<2x8x64xf32, #tpu.memory_space<vmem>>, vector<2x8x64xf32>
      tpu.vector_store %arg10[%c0_20, %c0_21, %c0_22], %21 {strides = array<i32>} : memref<2x8x64xf32, #tpu.memory_space<vmem>>, vector<2x8x64xf32>,
    } else {
    }
    %c0 = arith.constant 0 : index
    %c0_1 = arith.constant 0 : index
    %c0_2 = arith.constant 0 : index
    %7 = vector.load %arg4[%c0, %c0_1, %c0_2] : memref<2x8x64xbf16, #tpu.memory_space<vmem>>, vector<2x8x64xbf16>
    %c0_3 = arith.constant 0 : index
    %c0_4 = arith.constant 0 : index
    %c0_5 = arith.constant 0 : index
    %8 = vector.load %arg5[%c0_3, %c0_4, %c0_5] : memref<2x8x64xbf16, #tpu.memory_space<vmem>>, vector<2x8x64xbf16>
    %c0_6 = arith.constant 0 : index
    %c0_7 = arith.constant 0 : index
    %c0_8 = arith.constant 0 : index
    %9 = vector.load %arg6[%c0_6, %c0_7, %c0_8] : memref<2x8x64xbf16, #tpu.memory_space<vmem>>, vector<2x8x64xbf16>
    "tpu.trace_start"() <{level = 10 : i32, message = "hqd,hkd->hqk"}> : () -> ()
    %cst = arith.constant dense<0.000000e+00> : vector<2x8x8xf32>
    %10 = tpu.matmul %7, %8, %cst {dimension_numbers = #tpu.dot_dimension_numbers<[2], [2], [1], [1], [0, 0, 0, 1, 1, 1], [0], [0]>} : vector<2x8x64xbf16>, vector<2x8x64xbf16>, vector<2x8x8xf32> -> vector<2x8x8xf32>
    "tpu.trace_stop"() : () -> ()
    %11 = arith.cmpi slt, %3, %1 : i32
    %12 = arith.extui %11 : i1 to i32
    %c0_i32_9 = arith.constant 0 : i32
    %13 = arith.cmpi ne, %12, %c0_i32_9 : i32
    scf.if %13 {
      %c0_11 = arith.constant 0 : index
      %c0_12 = arith.constant 0 : index
      %c0_13 = arith.constant 0 : index
      %17 = vector.load %arg8[%c0_11, %c0_12, %c0_13] : memref<2x8x1xf32, #tpu.memory_space<vmem>>, vector<2x8x1xf32>
      %cst_14 = arith.constant dense<0xFF800000> : vector<2x8xf32>
      %18 = vector.multi_reduction <maximumf>, %10, %cst_14 [2] : vector<2x8x8xf32> to vector<2x8xf32>
      %19 = vector.shape_cast %18 : vector<2x8xf32> to vector<2x8x1xf32>
      %20 = arith.maximumf %17, %19 : vector<2x8x1xf32>
      %21 = arith.subf %17, %20 : vector<2x8x1xf32>
      %22 = math.exp %21 : vector<2x8x1xf32>
      %23 = vector.broadcast %20 : vector<2x8x1xf32> to vector<2x8x8xf32>
      %24 = arith.subf %10, %23 : vector<2x8x8xf32>
      %25 = math.exp %24 : vector<2x8x8xf32>
      %c0_15 = arith.constant 0 : index
      %c0_16 = arith.constant 0 : index
      %c0_17 = arith.constant 0 : index
      %26 = vector.load %arg9[%c0_15, %c0_16, %c0_17] : memref<2x8x1xf32, #tpu.memory_space<vmem>>, vector<2x8x1xf32>
      %27 = arith.mulf %22, %26 : vector<2x8x1xf32>
      %cst_18 = arith.constant dense<0.000000e+00> : vector<2x8xf32>
      %28 = vector.multi_reduction <add>, %25, %cst_18 [2] : vector<2x8x8xf32> to vector<2x8xf32>
      %29 = vector.shape_cast %28 : vector<2x8xf32> to vector<2x8x1xf32>
      %30 = arith.addf %27, %29 : vector<2x8x1xf32>
      %c0_19 = arith.constant 0 : index
      %c0_20 = arith.constant 0 : index
      %c0_21 = arith.constant 0 : index
      %31 = vector.load %arg9[%c0_19, %c0_20, %c0_21] : memref<2x8x1xf32, #tpu.memory_space<vmem>>, vector<2x8x1xf32>
      tpu.vector_store %arg9[%c0_19, %c0_20, %c0_21], %30 {strides = array<i32>} : memref<2x8x1xf32, #tpu.memory_space<vmem>>, vector<2x8x1xf32>,
      %32 = arith.truncf %25 : vector<2x8x8xf32> to vector<2x8x8xbf16>
      "tpu.trace_start"() <{level = 10 : i32, message = "hqk,hkd->hqd"}> : () -> ()
      %cst_22 = arith.constant dense<0.000000e+00> : vector<2x8x64xf32>
      %33 = tpu.matmul %32, %9, %cst_22 {dimension_numbers = #tpu.dot_dimension_numbers<[2], [1], [1], [2], [0, 0, 0, 1, 1, 2], [0], [0]>} : vector<2x8x8xbf16>, vector<2x8x64xbf16>, vector<2x8x64xf32> -> vector<2x8x64xf32>
      "tpu.trace_stop"() : () -> ()
      %c0_23 = arith.constant 0 : index
      %c0_24 = arith.constant 0 : index
      %c0_25 = arith.constant 0 : index
      %34 = vector.load %arg10[%c0_23, %c0_24, %c0_25] : memref<2x8x64xf32, #tpu.memory_space<vmem>>, vector<2x8x64xf32>
      %35 = vector.broadcast %22 : vector<2x8x1xf32> to vector<2x8x64xf32>
      %36 = arith.mulf %35, %34 : vector<2x8x64xf32>
      %37 = arith.addf %36, %33 : vector<2x8x64xf32>
      %c0_26 = arith.constant 0 : index
      %c0_27 = arith.constant 0 : index
      %c0_28 = arith.constant 0 : index
      %38 = vector.load %arg10[%c0_26, %c0_27, %c0_28] : memref<2x8x64xf32, #tpu.memory_space<vmem>>, vector<2x8x64xf32>
      tpu.vector_store %arg10[%c0_26, %c0_27, %c0_28], %37 {strides = array<i32>} : memref<2x8x64xf32, #tpu.memory_space<vmem>>, vector<2x8x64xf32>,
      %c0_29 = arith.constant 0 : index
      %c0_30 = arith.constant 0 : index
      %c0_31 = arith.constant 0 : index
      %39 = vector.load %arg8[%c0_29, %c0_30, %c0_31] : memref<2x8x1xf32, #tpu.memory_space<vmem>>, vector<2x8x1xf32>
      tpu.vector_store %arg8[%c0_29, %c0_30, %c0_31], %20 {strides = array<i32>} : memref<2x8x1xf32, #tpu.memory_space<vmem>>, vector<2x8x1xf32>,
    } else {
    }
    %14 = arith.cmpi eq, %3, %1 : i32
    %15 = arith.extui %14 : i1 to i32
    %c0_i32_10 = arith.constant 0 : i32
    %16 = arith.cmpi ne, %15, %c0_i32_10 : i32
    scf.if %16 {
      %17 = tpu.iota {dimensions = array<i32: 1>} : vector<2x8x8xi32>
      %18 = tpu.iota {dimensions = array<i32: 2>} : vector<2x8x8xi32>
      %19 = arith.cmpi sle, %18, %17 : vector<2x8x8xi32>
      %cst_11 = arith.constant -1.000000e+30 : f32
      %20 = vector.broadcast %cst_11 : f32 to vector<2x8x8xf32>
      %21 = arith.select %19, %10, %20 : vector<2x8x8xi1>, vector<2x8x8xf32>
      %c0_12 = arith.constant 0 : index
      %c0_13 = arith.constant 0 : index
      %c0_14 = arith.constant 0 : index
      %22 = vector.load %arg8[%c0_12, %c0_13, %c0_14] : memref<2x8x1xf32, #tpu.memory_space<vmem>>, vector<2x8x1xf32>
      %cst_15 = arith.constant dense<0xFF800000> : vector<2x8xf32>
      %23 = vector.multi_reduction <maximumf>, %21, %cst_15 [2] : vector<2x8x8xf32> to vector<2x8xf32>
      %24 = vector.shape_cast %23 : vector<2x8xf32> to vector<2x8x1xf32>
      %25 = arith.maximumf %22, %24 : vector<2x8x1xf32>
      %26 = arith.subf %22, %25 : vector<2x8x1xf32>
      %27 = math.exp %26 : vector<2x8x1xf32>
      %28 = vector.broadcast %25 : vector<2x8x1xf32> to vector<2x8x8xf32>
      %29 = arith.subf %21, %28 : vector<2x8x8xf32>
      %30 = math.exp %29 : vector<2x8x8xf32>
      %c0_16 = arith.constant 0 : index
      %c0_17 = arith.constant 0 : index
      %c0_18 = arith.constant 0 : index
      %31 = vector.load %arg9[%c0_16, %c0_17, %c0_18] : memref<2x8x1xf32, #tpu.memory_space<vmem>>, vector<2x8x1xf32>
      %32 = arith.mulf %27, %31 : vector<2x8x1xf32>
      %cst_19 = arith.constant dense<0.000000e+00> : vector<2x8xf32>
      %33 = vector.multi_reduction <add>, %30, %cst_19 [2] : vector<2x8x8xf32> to vector<2x8xf32>
      %34 = vector.shape_cast %33 : vector<2x8xf32> to vector<2x8x1xf32>
      %35 = arith.addf %32, %34 : vector<2x8x1xf32>
      %c0_20 = arith.constant 0 : index
      %c0_21 = arith.constant 0 : index
      %c0_22 = arith.constant 0 : index
      %36 = vector.load %arg9[%c0_20, %c0_21, %c0_22] : memref<2x8x1xf32, #tpu.memory_space<vmem>>, vector<2x8x1xf32>
      tpu.vector_store %arg9[%c0_20, %c0_21, %c0_22], %35 {strides = array<i32>} : memref<2x8x1xf32, #tpu.memory_space<vmem>>, vector<2x8x1xf32>,
      %37 = arith.truncf %30 : vector<2x8x8xf32> to vector<2x8x8xbf16>
      "tpu.trace_start"() <{level = 10 : i32, message = "hqk,hkd->hqd"}> : () -> ()
      %cst_23 = arith.constant dense<0.000000e+00> : vector<2x8x64xf32>
      %38 = tpu.matmul %37, %9, %cst_23 {dimension_numbers = #tpu.dot_dimension_numbers<[2], [1], [1], [2], [0, 0, 0, 1, 1, 2], [0], [0]>} : vector<2x8x8xbf16>, vector<2x8x64xbf16>, vector<2x8x64xf32> -> vector<2x8x64xf32>
      "tpu.trace_stop"() : () -> ()
      %c0_24 = arith.constant 0 : index
      %c0_25 = arith.constant 0 : index
      %c0_26 = arith.constant 0 : index
      %39 = vector.load %arg10[%c0_24, %c0_25, %c0_26] : memref<2x8x64xf32, #tpu.memory_space<vmem>>, vector<2x8x64xf32>
      %40 = vector.broadcast %27 : vector<2x8x1xf32> to vector<2x8x64xf32>
      %41 = arith.mulf %40, %39 : vector<2x8x64xf32>
      %42 = arith.addf %41, %38 : vector<2x8x64xf32>
      %c0_27 = arith.constant 0 : index
      %c0_28 = arith.constant 0 : index
      %c0_29 = arith.constant 0 : index
      %43 = vector.load %arg10[%c0_27, %c0_28, %c0_29] : memref<2x8x64xf32, #tpu.memory_space<vmem>>, vector<2x8x64xf32>
      tpu.vector_store %arg10[%c0_27, %c0_28, %c0_29], %42 {strides = array<i32>} : memref<2x8x64xf32, #tpu.memory_space<vmem>>, vector<2x8x64xf32>,
      %c0_30 = arith.constant 0 : index
      %c0_31 = arith.constant 0 : index
      %c0_32 = arith.constant 0 : index
      %44 = vector.load %arg8[%c0_30, %c0_31, %c0_32] : memref<2x8x1xf32, #tpu.memory_space<vmem>>, vector<2x8x1xf32>
      tpu.vector_store %arg8[%c0_30, %c0_31, %c0_32], %25 {strides = array<i32>} : memref<2x8x1xf32, #tpu.memory_space<vmem>>, vector<2x8x1xf32>,
      %c0_33 = arith.constant 0 : index
      %c0_34 = arith.constant 0 : index
      %c0_35 = arith.constant 0 : index
      %45 = vector.load %arg9[%c0_33, %c0_34, %c0_35] : memref<2x8x1xf32, #tpu.memory_space<vmem>>, vector<2x8x1xf32>
      %46 = tpu.reciprocal %45 {approx = true} : vector<2x8x1xf32> -> vector<2x8x1xf32>
      %c0_36 = arith.constant 0 : index
      %c0_37 = arith.constant 0 : index
      %c0_38 = arith.constant 0 : index
      %47 = vector.load %arg10[%c0_36, %c0_37, %c0_38] : memref<2x8x64xf32, #tpu.memory_space<vmem>>, vector<2x8x64xf32>
      %48 = vector.broadcast %46 : vector<2x8x1xf32> to vector<2x8x64xf32>
      %49 = arith.mulf %47, %48 : vector<2x8x64xf32>
      %c0_39 = arith.constant 0 : index
      %c0_40 = arith.constant 0 : index
      %c0_41 = arith.constant 0 : index
      %50 = vector.load %arg7[%c0_39, %c0_40, %c0_41] : memref<2x8x64xf32, #tpu.memory_space<vmem>>, vector<2x8x64xf32>
      tpu.vector_store %arg7[%c0_39, %c0_40, %c0_41], %49 {strides = array<i32>} : memref<2x8x64xf32, #tpu.memory_space<vmem>>, vector<2x8x64xf32>,
    } else {
    }
    return
  }
  func.func @transform_0(%arg0: i32, %arg1: i32, %arg2: memref<1xi32, #tpu.memory_space<smem>>, %arg3: memref<1xi32, #tpu.memory_space<smem>>) -> (i32, i32, i32) {
    %0 = arith.index_cast %arg1 : i32 to index
    %1 = memref.load %arg2[%0] : memref<1xi32, #tpu.memory_space<smem>>
    %c0_i32 = arith.constant 0 : i32
    %c0_i32_0 = arith.constant 0 : i32
    return %arg0, %1, %c0_i32 : i32, i32, i32
  }
  func.func @transform_1(%arg0: i32, %arg1: i32, %arg2: memref<1xi32, #tpu.memory_space<smem>>, %arg3: memref<1xi32, #tpu.memory_space<smem>>) -> (i32, i32, i32) {
    %0 = arith.index_cast %arg1 : i32 to index
    %1 = memref.load %arg3[%0] : memref<1xi32, #tpu.memory_space<smem>>
    %c0_i32 = arith.constant 0 : i32
    %c0_i32_0 = arith.constant 0 : i32
    return %arg0, %1, %c0_i32 : i32, i32, i32
  }
  func.func @transform_2(%arg0: i32, %arg1: i32, %arg2: memref<1xi32, #tpu.memory_space<smem>>, %arg3: memref<1xi32, #tpu.memory_space<smem>>) -> (i32, i32, i32) {
    %0 = arith.index_cast %arg1 : i32 to index
    %1 = memref.load %arg3[%0] : memref<1xi32, #tpu.memory_space<smem>>
    %c0_i32 = arith.constant 0 : i32
    %c0_i32_0 = arith.constant 0 : i32
    return %arg0, %1, %c0_i32 : i32, i32, i32
  }
  func.func @transform_3(%arg0: i32, %arg1: i32, %arg2: memref<1xi32, #tpu.memory_space<smem>>, %arg3: memref<1xi32, #tpu.memory_space<smem>>) -> (i32, i32, i32) {
    %0 = arith.index_cast %arg1 : i32 to index
    %1 = memref.load %arg2[%0] : memref<1xi32, #tpu.memory_space<smem>>
    %c0_i32 = arith.constant 0 : i32
    %c0_i32_0 = arith.constant 0 : i32
    return %arg0, %1, %c0_i32 : i32, i32, i32
  }
}

</mosaic_0001>

<llo_original>
// kernel: core_attention.1
$region0: #{core_attention.1}
  #allocation0 [shape = 'u32[]', space=smem, size = 0x4, offset = 0x4, fixed_abs, tag = 'smem constant byte address 0x4 - core index']
  #allocation1 [shape = 'u32[72,128]{1,0:T(1,128)}', space=vmem, size = 0x9000, scoped, tag = 'internal scratch']
  #allocation2 [shape = 'f32[2,8,1]{2,1,0:T(8,128)}', space=vmem, size = 0x2000, scoped, tag = 'scratch operand']
  #allocation3 [shape = 'f32[2,8,1]{2,1,0:T(8,128)}', space=vmem, size = 0x2000, scoped, tag = 'scratch operand']
  #allocation4 [shape = 'f32[2,8,64]{2,1,0:T(8,128)}', space=vmem, size = 0x2000, scoped, tag = 'scratch operand']
  #allocation5 [shape = 's32[1]{0}', space=sflag, size = 0x4, scoped, tag = 'scoped memory for core_attention.1']
  #allocation6 [shape = 's32[1]{0:T(128)S(6)}', space=smem, size = 0x200, scoped, tag = 'prefetched SMEM operand 0']
  #allocation7 [shape = 's32[1]{0:T(128)S(6)}', space=smem, size = 0x200, scoped, tag = 'prefetched SMEM operand 1']
  %s0 = inlined_call_operand.<no memory space> [shape: s32[1], index: 0, kind: input, shape index: {}, may-alias: {0,1}]
  %s1 = inlined_call_operand.<no memory space> [shape: s32[1], index: 1, kind: input, shape index: {}, may-alias: {0,1}]
  %s2 = inlined_call_operand.vmem [shape: bf16[8,8,64], index: 2, kind: input, shape index: {}]
  %s3 = inlined_call_operand.vmem [shape: bf16[8,8,64], index: 3, kind: input, shape index: {}]
  %s4 = inlined_call_operand.vmem [shape: bf16[8,8,64], index: 4, kind: input, shape index: {}]
  %s5 = inlined_call_operand.vmem [shape: f32[8,8,64], index: 5, kind: output, shape index: {}]
  %s6 = sld [smem:[#allocation0]]
  $region57: #{core_attention.1} parent=0
    _
  %s8 = ssub.s32 1, %s6
  %s9 = scalar_select 0, %s8, %s6
  %10 = sst [smem:[#allocation6]] %s0
  %11 = sst [smem:[#allocation7]] %s1
  loop: start=0, step=1, limit=6
  $region2: #{core_attention.1} parent=0 // loop_pre_header
    _
  $region3: #{core_attention.1} parent=0 // loop_header
    %s13 = sphi 0, %s17
    %p14 = scmp.ge.s32.totalorder %s13, 6
    %s20 = sphi 0, %s32
    %s21 = sphi 0, %s28
    %s22 = sphi 0, %s20
    %s23 = sphi 0, %s21
    %s24 = sphi 0, %s22
    %s25 = sphi 0, %s23
    %s39 = sphi 0, %s41
    %s42 = sphi 0, %s39
    %s43 = sphi 0, %s42
    %s59 = sphi 0, %s43
    %s69 = sphi 0, %s71
    %s72 = sphi 0, %s69
    %s73 = sphi 0, %s72
    %s89 = sphi 0, %s73
    %s99 = sphi 0, %s101
    %s102 = sphi 0, %s99
    %s103 = sphi 0, %s102
    %s119 = sphi 0, %s103
    %s129 = sphi 0, %s131
    %s132 = sphi 0, %s129
    %s133 = sphi 0, %s132
    %s149 = sphi 0, %s133
  $region4: #{core_attention.1} parent=0 // loop_header_branch
    %16 = sbr.rel (%p14) target = $region8
  $region5: #{core_attention.1} parent=0 // loop_body
    %s18 = ssub.s32 %s13, 1
    %s19 = ssub.s32 %s13, 2
    %s26 = sadd.s32 1, %s21
    %p27 = scmp.ge.s32.totalorder %s26, 1
    %s28 = scalar_select %p27, 0, %s26
    %s29 = sadd.s32 1, %s20
    %s30 = scalar_select %p27, %s29, %s20
    %p31 = scmp.ge.s32.totalorder %s30, 4
    %s32 = scalar_select %p31, 0, %s30
    %s33 = sld [smem:[#allocation6 + %s21]]
    %s34 = sld [smem:[#allocation6 + %s28]]
    %s35 = ssub.s32 %s20, %s32
    %s36 = ssub.s32 %s33, %s34
    %s37 = sor.u32 %s35, %s36
    %p38 = scmp.eq.s32.totalorder %s37, 0
    %s40 = sadd.s32 %s39, 1
    %s41 = scalar_select %p38, %s39, %s40
    %p44 = pneg %p38
    %p45 = scmp.eq.s32.totalorder %s13, 3
    %p46 = por %p44, %p45
    %p47 = scmp.ne.s32.totalorder %s39, %s42
    %p48 = scmp.eq.s32.totalorder %s13, 0
    %p49 = por %p47, %p48
    %p50 = scmp.ne.s32.totalorder %s39, %s42
    %p51 = scmp.eq.s32.totalorder %s18, 3
    %p52 = por %p50, %p51
    %p53 = scmp.ne.s32.totalorder %s42, %s43
    %p54 = scmp.eq.s32.totalorder %s18, 0
    %p55 = por %p53, %p54
    %p56 = scmp.ne.s32.totalorder %s42, %s43
    %p57 = scmp.eq.s32.totalorder %s19, 3
    %p58 = por %p56, %p57
    %p60 = scmp.ne.s32.totalorder %s43, %s59
    %p61 = scmp.eq.s32.totalorder %s19, 0
    %p62 = por %p60, %p61
    %s63 = sld [smem:[#allocation7 + %s21]]
    %s64 = sld [smem:[#allocation7 + %s28]]
    %s65 = ssub.s32 %s20, %s32
    %s66 = ssub.s32 %s63, %s64
    %s67 = sor.u32 %s65, %s66
    %p68 = scmp.eq.s32.totalorder %s67, 0
    %s70 = sadd.s32 %s69, 1
    %s71 = scalar_select %p68, %s69, %s70
    %p74 = pneg %p68
    %p75 = scmp.eq.s32.totalorder %s13, 3
    %p76 = por %p74, %p75
    %p77 = scmp.ne.s32.totalorder %s69, %s72
    %p78 = scmp.eq.s32.totalorder %s13, 0
    %p79 = por %p77, %p78
    %p80 = scmp.ne.s32.totalorder %s69, %s72
    %p81 = scmp.eq.s32.totalorder %s18, 3
    %p82 = por %p80, %p81
    %p83 = scmp.ne.s32.totalorder %s72, %s73
    %p84 = scmp.eq.s32.totalorder %s18, 0
    %p85 = por %p83, %p84
    %p86 = scmp.ne.s32.totalorder %s72, %s73
    %p87 = scmp.eq.s32.totalorder %s19, 3
    %p88 = por %p86, %p87
    %p90 = scmp.ne.s32.totalorder %s73, %s89
    %p91 = scmp.eq.s32.totalorder %s19, 0
    %p92 = por %p90, %p91
    %s93 = sld [smem:[#allocation7 + %s21]]
    %s94 = sld [smem:[#allocation7 + %s28]]
    %s95 = ssub.s32 %s20, %s32
    %s96 = ssub.s32 %s93, %s94
    %s97 = sor.u32 %s95, %s96
    %p98 = scmp.eq.s32.totalorder %s97, 0
    %s100 = sadd.s32 %s99, 1
    %s101 = scalar_select %p98, %s99, %s100
    %p104 = pneg %p98
    %p105 = scmp.eq.s32.totalorder %s13, 3
    %p106 = por %p104, %p105
    %p107 = scmp.ne.s32.totalorder %s99, %s102
    %p108 = scmp.eq.s32.totalorder %s13, 0
    %p109 = por %p107, %p108
    %p110 = scmp.ne.s32.totalorder %s99, %s102
    %p111 = scmp.eq.s32.totalorder %s18, 3
    %p112 = por %p110, %p111
    %p113 = scmp.ne.s32.totalorder %s102, %s103
    %p114 = scmp.eq.s32.totalorder %s18, 0
    %p115 = por %p113, %p114
    %p116 = scmp.ne.s32.totalorder %s102, %s103
    %p117 = scmp.eq.s32.totalorder %s19, 3
    %p118 = por %p116, %p117
    %p120 = scmp.ne.s32.totalorder %s103, %s119
    %p121 = scmp.eq.s32.totalorder %s19, 0
    %p122 = por %p120, %p121
    %s123 = sld [smem:[#allocation6 + %s21]]
    %s124 = sld [smem:[#allocation6 + %s28]]
    %s125 = ssub.s32 %s20, %s32
    %s126 = ssub.s32 %s123, %s124
    %s127 = sor.u32 %s125, %s126
    %p128 = scmp.eq.s32.totalorder %s127, 0
    %s130 = sadd.s32 %s129, 1
    %s131 = scalar_select %p128, %s129, %s130
    %p134 = pneg %p128
    %p135 = scmp.eq.s32.totalorder %s13, 3
    %p136 = por %p134, %p135
    %p137 = scmp.ne.s32.totalorder %s129, %s132
    %p138 = scmp.eq.s32.totalorder %s13, 0
    %p139 = por %p137, %p138
    %p140 = scmp.ne.s32.totalorder %s129, %s132
    %p141 = scmp.eq.s32.totalorder %s18, 3
    %p142 = por %p140, %p141
    %p143 = scmp.ne.s32.totalorder %s132, %s133
    %p144 = scmp.eq.s32.totalorder %s18, 0
    %p145 = por %p143, %p144
    %p146 = scmp.ne.s32.totalorder %s132, %s133
    %p147 = scmp.eq.s32.totalorder %s19, 3
    %p148 = por %p146, %p147
    %p150 = scmp.ne.s32.totalorder %s133, %s149
    %p151 = scmp.eq.s32.totalorder %s19, 0
    %p152 = por %p150, %p151
    %p153 = scmp.le.s32.totalorder 1, %s13
    %p154 = scmp.lt.s32.totalorder %s13, 5
    %p155 = pnand %p153, %p154
    %p156 = pneg %p155
    // Predicated region
    $region9: #{core_attention.1} parent=5 // pred_check
      _
    $region10: #{core_attention.1} parent=5 // pred_check_branch
      %158 = sbr.rel (%p155) target = $region12
    $region11: #{core_attention.1} parent=5 // pred_region
      %s159 = ssub.s32 %s13, 1
    $region12: #{core_attention.1} parent=5 // pred_fallthru
      _
    %p160 = scmp.lt.s32.totalorder %s13, 4
    // Predicated region
    $region13: #{core_attention.1} parent=5 // pred_check
      %p161 = pneg %p160
    $region14: #{core_attention.1} parent=5 // pred_check_branch
      %163 = sbr.rel (%p161) target = $region16
    $region15: #{core_attention.1} parent=5 // pred_region
      // Predicated region
      $region17: #{core_attention.1} parent=15 // pred_check
        %p164 = pneg %p49
      $region18: #{core_attention.1} parent=15 // pred_check_branch
        %166 = sbr.rel (%p164) target = $region20
      $region19: #{core_attention.1} parent=15 // pred_region
        %s167 = sld [smem:[#allocation6 + %s21]]
        %s168 = smul.u32 2, %s20
        %p169 = scmp.lt.s32.totalorder %s168, 7
        %s170 = scalar_select %p169, %s168, 7
        %p171 = scmp.lt.s32.totalorder %s167, 0
        %s172 = scalar_select %p171, %s167, 0
        %s173 = sadd.s32 %s172, %s170
        %s174 = smul.addr %s173, 4
        %s175 = scalar_lea.vmem %s2, %s174
        %s176 = sld [smem:[#allocation6 + %s21]]
        %s177 = smul.u32 2, %s20
      $region20: #{core_attention.1} parent=15 // pred_fallthru
        _
      // Predicated region
      $region21: #{core_attention.1} parent=15 // pred_check
        %p178 = pneg %p79
      $region22: #{core_attention.1} parent=15 // pred_check_branch
        %180 = sbr.rel (%p178) target = $region24
      $region23: #{core_attention.1} parent=15 // pred_region
        %s181 = sld [smem:[#allocation7 + %s21]]
        %s182 = smul.u32 2, %s20
        %p183 = scmp.lt.s32.totalorder %s182, 7
        %s184 = scalar_select %p183, %s182, 7
        %p185 = scmp.lt.s32.totalorder %s181, 0
        %s186 = scalar_select %p185, %s181, 0
        %s187 = sadd.s32 %s186, %s184
        %s188 = smul.addr %s187, 4
        %s189 = scalar_lea.vmem %s3, %s188
        %s190 = sld [smem:[#allocation7 + %s21]]
        %s191 = smul.u32 2, %s20
      $region24: #{core_attention.1} parent=15 // pred_fallthru
        _
      // Predicated region
      $region25: #{core_attention.1} parent=15 // pred_check
        %p192 = pneg %p109
      $region26: #{core_attention.1} parent=15 // pred_check_branch
        %194 = sbr.rel (%p192) target = $region28
      $region27: #{core_attention.1} parent=15 // pred_region
        %s195 = sld [smem:[#allocation7 + %s21]]
        %s196 = smul.u32 2, %s20
        %p197 = scmp.lt.s32.totalorder %s196, 7
        %s198 = scalar_select %p197, %s196, 7
        %p199 = scmp.lt.s32.totalorder %s195, 0
        %s200 = scalar_select %p199, %s195, 0
        %s201 = sadd.s32 %s200, %s198
        %s202 = smul.addr %s201, 4
        %s203 = scalar_lea.vmem %s4, %s202
        %s204 = sld [smem:[#allocation7 + %s21]]
        %s205 = smul.u32 2, %s20
      $region28: #{core_attention.1} parent=15 // pred_fallthru
        _
    $region16: #{core_attention.1} parent=5 // pred_fallthru
      _
    %p206 = scmp.le.s32.totalorder 1, %s13
    %p207 = scmp.lt.s32.totalorder %s13, 5
    %p208 = pnand %p206, %p207
    %p209 = pneg %p208
    // Predicated region
    $region29: #{core_attention.1} parent=5 // pred_check
      _
    $region30: #{core_attention.1} parent=5 // pred_check_branch
      %211 = sbr.rel (%p208) target = $region32
    $region31: #{core_attention.1} parent=5 // pred_region
      %s212 = ssub.s32 %s13, 1
      %s213 = sld [smem:[#allocation6 + %s23]]
      %s214 = smul.u32 2, %s22
      %p215 = scmp.lt.s32.totalorder %s214, 7
      %s216 = scalar_select %p215, %s214, 7
      %p217 = scmp.lt.s32.totalorder %s213, 0
      %s218 = scalar_select %p217, %s213, 0
      %s219 = sadd.s32 %s218, %s216
      %s220 = smul.addr %s219, 4
      %s221 = scalar_lea.vmem %s2, %s220
      %p222 = pneg %p55
      %p223 = pneg %p52
      %s224 = sld [smem:[#allocation7 + %s23]]
      %s225 = smul.u32 2, %s22
      %p226 = scmp.lt.s32.totalorder %s225, 7
      %s227 = scalar_select %p226, %s225, 7
      %p228 = scmp.lt.s32.totalorder %s224, 0
      %s229 = scalar_select %p228, %s224, 0
      %s230 = sadd.s32 %s229, %s227
      %s231 = smul.addr %s230, 4
      %s232 = scalar_lea.vmem %s3, %s231
      %p233 = pneg %p85
      %p234 = pneg %p82
      %s235 = sld [smem:[#allocation7 + %s23]]
      %s236 = smul.u32 2, %s22
      %p237 = scmp.lt.s32.totalorder %s236, 7
      %s238 = scalar_select %p237, %s236, 7
      %p239 = scmp.lt.s32.totalorder %s235, 0
      %s240 = scalar_select %p239, %s235, 0
      %s241 = sadd.s32 %s240, %s238
      %s242 = smul.addr %s241, 4
      %s243 = scalar_lea.vmem %s4, %s242
      %p244 = pneg %p115
      %p245 = pneg %p112
      %p246 = pneg %p145
      %p247 = pneg %p142
      %s248 = sld [smem:[#allocation6 + %s23]]
      %s249 = smul.u32 2, %s22
      %p250 = scmp.lt.s32.totalorder %s249, 7
      %s251 = scalar_select %p250, %s249, 7
      %p252 = scmp.lt.s32.totalorder %s248, 0
      %s253 = scalar_select %p252, %s248, 0
      %s254 = sadd.s32 %s253, %s251
      %s255 = smul.addr %s254, 8
      %s256 = scalar_lea.vmem %s5, %s255
      %s257 = sld [smem:[#allocation6 + %s23]]
      %s258 = smul.u32 2, %s22
      %p259 = scmp.lt.s32.totalorder %s258, 7
      %s260 = scalar_select %p259, %s258, 7
      %p261 = scmp.lt.s32.totalorder %s257, 0
      %s262 = scalar_select %p261, %s257, 0
      %s263 = sadd.s32 %s262, %s260
      %s264 = smul.addr %s263, 4
      %s265 = scalar_lea.vmem %s2, %s264
      %s266 = sld [smem:[#allocation6 + %s23]]
      %s267 = smul.u32 2, %s22
      %s268 = sld [smem:[#allocation7 + %s23]]
      %s269 = smul.u32 2, %s22
      %p270 = scmp.lt.s32.totalorder %s269, 7
      %s271 = scalar_select %p270, %s269, 7
      %p272 = scmp.lt.s32.totalorder %s268, 0
      %s273 = scalar_select %p272, %s268, 0
      %s274 = sadd.s32 %s273, %s271
      %s275 = smul.addr %s274, 4
      %s276 = scalar_lea.vmem %s3, %s275
      %s277 = sld [smem:[#allocation7 + %s23]]
      %s278 = smul.u32 2, %s22
      %s279 = sld [smem:[#allocation7 + %s23]]
      %s280 = smul.u32 2, %s22
      %p281 = scmp.lt.s32.totalorder %s280, 7
      %s282 = scalar_select %p281, %s280, 7
      %p283 = scmp.lt.s32.totalorder %s279, 0
      %s284 = scalar_select %p283, %s279, 0
      %s285 = sadd.s32 %s284, %s282
      %s286 = smul.addr %s285, 4
      %s287 = scalar_lea.vmem %s4, %s286
      %s288 = sld [smem:[#allocation7 + %s23]]
      %s289 = smul.u32 2, %s22
      %s290 = sld [smem:[#allocation6 + %s23]]
      %s291 = smul.u32 2, %s22
      %p292 = scmp.lt.s32.totalorder %s291, 7
      %s293 = scalar_select %p292, %s291, 7
      %p294 = scmp.lt.s32.totalorder %s290, 0
      %s295 = scalar_select %p294, %s290, 0
      %s296 = sadd.s32 %s295, %s293
      %s297 = smul.addr %s296, 8
      %s298 = scalar_lea.vmem %s5, %s297
      %s299 = sld [smem:[#allocation6 + %s23]]
      %s300 = smul.u32 2, %s22
      %s302 = sld [smem:[#allocation6 + %s23]]
      %s303 = sld [smem:[#allocation7 + %s23]]
      %p304 = scmp.eq.s32.totalorder %s303, 0
      // Predicated region
      $region33: #{core_attention.1} parent=31 // pred_check
        %p305 = pneg %p304
      $region34: #{core_attention.1} parent=31 // pred_check_branch
        %307 = sbr.rel (%p305) target = $region36
      $region35: #{core_attention.1} parent=31 // pred_region
        %vm308 = vcmask 7168
        %309 = vst.msk [vmem:[#allocation2] sm:$0xff] %vm308, -1e+30
        %310 = vst.msk [vmem:[#allocation2 + $0x8] sm:$0xff] %vm308, -1e+30
        %311 = vst.msk [vmem:[#allocation3] sm:$0xff] %vm308, 0.0
        %312 = vst.msk [vmem:[#allocation3 + $0x8] sm:$0xff] %vm308, 0.0
        %vm313 = vcmask 523264
        %314 = vst.msk [vmem:[#allocation4] sm:$0xff] %vm313, 0.0
        %315 = vst.msk [vmem:[#allocation4 + $0x8] sm:$0xff] %vm313, 0.0
      $region36: #{core_attention.1} parent=31 // pred_fallthru
        _
      %v316 = vld [vmem:[%s265] sm:$0xf]
      %v317 = vld [vmem:[%s265 + $0x4] sm:$0xf]
      %v318 = vld [vmem:[%s276] sm:$0xf]
      %v319 = vld [vmem:[%s276 + $0x4] sm:$0xf]
      %v320 = vld [vmem:[%s287] sm:$0xf]
      %v321 = vld [vmem:[%s287 + $0x4] sm:$0xf]
      %vm322 = vcmask 523264
      %v324 = vsel %vm322, %v316, 0
      %v327 = vsel %vm322, %v318, 0
      %329 = vmatpush.bf16.xpose.msra.mxu0 0
      %330 = vmatpush.bf16.xpose.msra.mxu0 0
      %331 = vmatpush.bf16.xpose.msra.mxu0 0
      %332 = vmatpush.bf16.xpose.msra.mxu0 0
      %333 = vmatpush.bf16.xpose.msra.mxu0 0
      %334 = vmatpush.bf16.xpose.msra.mxu0 0
      %335 = vmatpush.bf16.xpose.msra.mxu0 0
      %336 = vmatpush.bf16.xpose.msra.mxu0 %v327
      %337 = vmatmul.bf16.gmra.mxu0 %v324
      %v338 = vpop.f32.mrf.mxu0
      %v339 = vadd.f32 0.0, %v338
      %v340 = vpop.f32.mrf.mxu0
      %341 = vdwg.mxu0
      %v343 = vsel %vm322, %v317, 0
      %v346 = vsel %vm322, %v319, 0
      %348 = vmatpush.bf16.xpose.msra.mxu0 0
      %349 = vmatpush.bf16.xpose.msra.mxu0 0
      %350 = vmatpush.bf16.xpose.msra.mxu0 0
      %351 = vmatpush.bf16.xpose.msra.mxu0 0
      %352 = vmatpush.bf16.xpose.msra.mxu0 0
      %353 = vmatpush.bf16.xpose.msra.mxu0 0
      %354 = vmatpush.bf16.xpose.msra.mxu0 0
      %355 = vmatpush.bf16.xpose.msra.mxu0 %v346
      %356 = vmatmul.bf16.gmra.mxu0 %v343
      %v357 = vpop.f32.mrf.mxu0
      %v358 = vadd.f32 0.0, %v357
      %v359 = vpop.f32.mrf.mxu0
      %360 = vdwg.mxu0
      %p361 = scmp.lt.s32.totalorder %s303, %s302
      // Predicated region
      $region37: #{core_attention.1} parent=31 // pred_check
        %p362 = pneg %p361
      $region38: #{core_attention.1} parent=31 // pred_check_branch
        %364 = sbr.rel (%p362) target = $region40
      $region39: #{core_attention.1} parent=31 // pred_region
        %v365 = vld [vmem:[#allocation2] sm:$0xff]
        %v366 = vld [vmem:[#allocation2 + $0x8] sm:$0xff]
        %vm367 = vcmask 64512
        %v368 = vsel %vm367, %v339, -inf
        %369 = vmax.xlane.f32.xlu0 %v368
        %v370 = vpop.xlane.xlu0 %369
        %v371 = vsel %vm367, %v358, -inf
        %372 = vmax.xlane.f32.xlu0 %v371
        %v373 = vpop.xlane.xlu0 %372
        %v374 = vmax.f32 %v365, %v370
        %v375 = vmax.f32 %v366, %v373
        %v376 = vsub.f32 %v365, %v374
        %v377 = vsub.f32 %v366, %v375
        %v378 = vmul.f32 %v376, 1.442695
        %v379 = vpow.pop %v378
        %v380 = vmul.f32 %v377, 1.442695
        %v381 = vpow.pop %v380
        %383 = vset.pattern.permute.xlu0 0
        %384 = vperm.xlu0 %383, %v374
        %v385 = vpop.permute.xlu0 %384
        %388 = vset.pattern.permute.xlu0 0
        %389 = vperm.xlu0 %388, %v375
        %v390 = vpop.permute.xlu0 %389
        %v392 = vsub.f32 %v339, %v385
        %v393 = vsub.f32 %v358, %v390
        %v394 = vmul.f32 %v392, 1.442695
        %v395 = vpow.pop %v394
        %v396 = vmul.f32 %v393, 1.442695
        %v397 = vpow.pop %v396
        %v398 = vld [vmem:[#allocation3] sm:$0xff]
        %v399 = vld [vmem:[#allocation3 + $0x8] sm:$0xff]
        %v400 = vmul.f32 %v379, %v398
        %v401 = vmul.f32 %v381, %v399
        %v402 = vsel %vm367, %v395, 0.0
        %403 = vadd.xlane.f32.xlu0 %v402
        %v404 = vpop.xlane.xlu0 %403
        %v405 = vsel %vm367, %v397, 0.0
        %406 = vadd.xlane.f32.xlu0 %v405
        %v407 = vpop.xlane.xlu0 %406
        %v408 = vadd.f32 %v400, %v404
        %v409 = vadd.f32 %v401, %v407
        %vm410 = vcmask 7168
        %411 = vst.msk [vmem:[#allocation3] sm:$0xff] %vm410, %v408
        %412 = vst.msk [vmem:[#allocation3 + $0x8] sm:$0xff] %vm410, %v409
        %v413 = vpack.c.bf16 %v395, %v395
        %v414 = vpack.c.bf16 %v397, %v397
        %v416 = vsel %vm367, %v413, 0
        %vm418 = vcmask 1043456
        %v420 = vsel %vm418, %v320, 0
        %422 = vmatpush.bf16.msra.mxu0 0
        %423 = vmatpush.bf16.msra.mxu0 0
        %424 = vmatpush.bf16.msra.mxu0 0
        %425 = vmatpush.bf16.msra.mxu0 0
        %426 = vmatpush.bf16.msra.mxu0 0
        %427 = vmatpush.bf16.msra.mxu0 0
        %428 = vmatpush.bf16.msra.mxu0 0
        %429 = vmatpush.bf16.msra.mxu0 %v420
        %430 = vmatmul.bf16.gmra.mxu0 %v416
        %v431 = vpop.f32.mrf.mxu0
        %v432 = vadd.f32 0.0, %v431
        %v433 = vpop.f32.mrf.mxu0
        %434 = vdwg.mxu0
        %v436 = vsel %vm367, %v414, 0
        %v439 = vsel %vm418, %v321, 0
        %441 = vmatpush.bf16.msra.mxu0 0
        %442 = vmatpush.bf16.msra.mxu0 0
        %443 = vmatpush.bf16.msra.mxu0 0
        %444 = vmatpush.bf16.msra.mxu0 0
        %445 = vmatpush.bf16.msra.mxu0 0
        %446 = vmatpush.bf16.msra.mxu0 0
        %447 = vmatpush.bf16.msra.mxu0 0
        %448 = vmatpush.bf16.msra.mxu0 %v439
        %449 = vmatmul.bf16.gmra.mxu0 %v436
        %v450 = vpop.f32.mrf.mxu0
        %v451 = vadd.f32 0.0, %v450
        %v452 = vpop.f32.mrf.mxu0
        %453 = vdwg.mxu0
        %v454 = vld [vmem:[#allocation4] sm:$0xff]
        %v455 = vld [vmem:[#allocation4 + $0x8] sm:$0xff]
        %457 = vset.pattern.permute.xlu0 0
        %458 = vperm.xlu0 %457, %v379
        %v459 = vpop.permute.xlu0 %458
        %462 = vset.pattern.permute.xlu0 0
        %463 = vperm.xlu0 %462, %v381
        %v464 = vpop.permute.xlu0 %463
        %v466 = vmul.f32 %v459, %v454
        %v467 = vmul.f32 %v464, %v455
        %v468 = vadd.f32 %v466, %v432
        %v469 = vadd.f32 %v467, %v451
        %470 = vst.msk [vmem:[#allocation4] sm:$0xff] %vm322, %v468
        %471 = vst.msk [vmem:[#allocation4 + $0x8] sm:$0xff] %vm322, %v469
        %472 = vst.msk [vmem:[#allocation2] sm:$0xff] %vm410, %v374
        %473 = vst.msk [vmem:[#allocation2 + $0x8] sm:$0xff] %vm410, %v375
      $region40: #{core_attention.1} parent=31 // pred_fallthru
        _
      %p474 = scmp.eq.s32.totalorder %s303, %s302
      // Predicated region
      $region41: #{core_attention.1} parent=31 // pred_check
        %p475 = pneg %p474
      $region42: #{core_attention.1} parent=31 // pred_check_branch
        %477 = sbr.rel (%p475) target = $region44
      $region43: #{core_attention.1} parent=31 // pred_region
        %v478 = vlaneseq
        %v479 = vshrl.u32 %v478, 7
        %v480 = vlaneseq
        %v481 = vand.u32 %v480, 127
        %vm482 = vcmp.le.s32.totalorder %v481, %v479
        %v483 = vsel %vm482, %v339, -1e+30
        %v484 = vsel %vm482, %v358, -1e+30
        %v485 = vld [vmem:[#allocation2] sm:$0xff]
        %v486 = vld [vmem:[#allocation2 + $0x8] sm:$0xff]
        %vm487 = vcmask 64512
        %v488 = vsel %vm487, %v483, -inf
        %489 = vmax.xlane.f32.xlu0 %v488
        %v490 = vpop.xlane.xlu0 %489
        %v491 = vsel %vm487, %v484, -inf
        %492 = vmax.xlane.f32.xlu0 %v491
        %v493 = vpop.xlane.xlu0 %492
        %v494 = vmax.f32 %v485, %v490
        %v495 = vmax.f32 %v486, %v493
        %v496 = vsub.f32 %v485, %v494
        %v497 = vsub.f32 %v486, %v495
        %v498 = vmul.f32 %v496, 1.442695
        %v499 = vpow.pop %v498
        %v500 = vmul.f32 %v497, 1.442695
        %v501 = vpow.pop %v500
        %503 = vset.pattern.permute.xlu0 0
        %504 = vperm.xlu0 %503, %v494
        %v505 = vpop.permute.xlu0 %504
        %508 = vset.pattern.permute.xlu0 0
        %509 = vperm.xlu0 %508, %v495
        %v510 = vpop.permute.xlu0 %509
        %v512 = vsub.f32 %v483, %v505
        %v513 = vsub.f32 %v484, %v510
        %v514 = vmul.f32 %v512, 1.442695
        %v515 = vpow.pop %v514
        %v516 = vmul.f32 %v513, 1.442695
        %v517 = vpow.pop %v516
        %v518 = vld [vmem:[#allocation3] sm:$0xff]
        %v519 = vld [vmem:[#allocation3 + $0x8] sm:$0xff]
        %v520 = vmul.f32 %v499, %v518
        %v521 = vmul.f32 %v501, %v519
        %v522 = vsel %vm487, %v515, 0.0
        %523 = vadd.xlane.f32.xlu0 %v522
        %v524 = vpop.xlane.xlu0 %523
        %v525 = vsel %vm487, %v517, 0.0
        %526 = vadd.xlane.f32.xlu0 %v525
        %v527 = vpop.xlane.xlu0 %526
        %v528 = vadd.f32 %v520, %v524
        %v529 = vadd.f32 %v521, %v527
        %vm530 = vcmask 7168
        %531 = vst.msk [vmem:[#allocation3] sm:$0xff] %vm530, %v528
        %532 = vst.msk [vmem:[#allocation3 + $0x8] sm:$0xff] %vm530, %v529
        %v533 = vpack.c.bf16 %v515, %v515
        %v534 = vpack.c.bf16 %v517, %v517
        %v536 = vsel %vm487, %v533, 0
        %vm538 = vcmask 1043456
        %v540 = vsel %vm538, %v320, 0
        %542 = vmatpush.bf16.msra.mxu0 0
        %543 = vmatpush.bf16.msra.mxu0 0
        %544 = vmatpush.bf16.msra.mxu0 0
        %545 = vmatpush.bf16.msra.mxu0 0
        %546 = vmatpush.bf16.msra.mxu0 0
        %547 = vmatpush.bf16.msra.mxu0 0
        %548 = vmatpush.bf16.msra.mxu0 0
        %549 = vmatpush.bf16.msra.mxu0 %v540
        %550 = vmatmul.bf16.gmra.mxu0 %v536
        %v551 = vpop.f32.mrf.mxu0
        %v552 = vadd.f32 0.0, %v551
        %v553 = vpop.f32.mrf.mxu0
        %554 = vdwg.mxu0
        %v556 = vsel %vm487, %v534, 0
        %v559 = vsel %vm538, %v321, 0
        %561 = vmatpush.bf16.msra.mxu0 0
        %562 = vmatpush.bf16.msra.mxu0 0
        %563 = vmatpush.bf16.msra.mxu0 0
        %564 = vmatpush.bf16.msra.mxu0 0
        %565 = vmatpush.bf16.msra.mxu0 0
        %566 = vmatpush.bf16.msra.mxu0 0
        %567 = vmatpush.bf16.msra.mxu0 0
        %568 = vmatpush.bf16.msra.mxu0 %v559
        %569 = vmatmul.bf16.gmra.mxu0 %v556
        %v570 = vpop.f32.mrf.mxu0
        %v571 = vadd.f32 0.0, %v570
        %v572 = vpop.f32.mrf.mxu0
        %573 = vdwg.mxu0
        %v574 = vld [vmem:[#allocation4] sm:$0xff]
        %v575 = vld [vmem:[#allocation4 + $0x8] sm:$0xff]
        %577 = vset.pattern.permute.xlu0 0
        %578 = vperm.xlu0 %577, %v499
        %v579 = vpop.permute.xlu0 %578
        %582 = vset.pattern.permute.xlu0 0
        %583 = vperm.xlu0 %582, %v501
        %v584 = vpop.permute.xlu0 %583
        %v586 = vmul.f32 %v579, %v574
        %v587 = vmul.f32 %v584, %v575
        %v588 = vadd.f32 %v586, %v552
        %v589 = vadd.f32 %v587, %v571
        %590 = vst.msk [vmem:[#allocation4] sm:$0xff] %vm322, %v588
        %591 = vst.msk [vmem:[#allocation4 + $0x8] sm:$0xff] %vm322, %v589
        %592 = vst.msk [vmem:[#allocation2] sm:$0xff] %vm530, %v494
        %593 = vst.msk [vmem:[#allocation2 + $0x8] sm:$0xff] %vm530, %v495
        %v594 = vld [vmem:[#allocation3] sm:$0xff]
        %v595 = vld [vmem:[#allocation3 + $0x8] sm:$0xff]
        %v596 = vrcp.pop %v594
        %v597 = vrcp.pop %v595
        %v598 = vld [vmem:[#allocation4] sm:$0xff]
        %v599 = vld [vmem:[#allocation4 + $0x8] sm:$0xff]
        %601 = vset.pattern.permute.xlu0 0
        %602 = vperm.xlu0 %601, %v596
        %v603 = vpop.permute.xlu0 %602
        %606 = vset.pattern.permute.xlu0 0
        %607 = vperm.xlu0 %606, %v597
        %v608 = vpop.permute.xlu0 %607
        %v610 = vmul.f32 %v598, %v603
        %v611 = vmul.f32 %v599, %v608
        %612 = vst.msk [vmem:[%s298] sm:$0xff] %vm322, %v610
        %613 = vst.msk [vmem:[%s298 + $0x8] sm:$0xff] %vm322, %v611
      $region44: #{core_attention.1} parent=31 // pred_fallthru
        _
      %s614 = sld [smem:[#allocation6 + %s23]]
      %s615 = smul.u32 2, %s22
      %p616 = scmp.lt.s32.totalorder %s615, 7
      %s617 = scalar_select %p616, %s615, 7
      %p618 = scmp.lt.s32.totalorder %s614, 0
      %s619 = scalar_select %p618, %s614, 0
      %s620 = sadd.s32 %s619, %s617
      %s621 = smul.addr %s620, 8
      %s622 = scalar_lea.vmem %s5, %s621
      // Predicated region
      $region45: #{core_attention.1} parent=31 // pred_check
        %p623 = pneg %p142
      $region46: #{core_attention.1} parent=31 // pred_check_branch
        %625 = sbr.rel (%p623) target = $region48
      $region47: #{core_attention.1} parent=31 // pred_region
        %s626 = sld [smem:[#allocation6 + %s23]]
        %s627 = smul.u32 2, %s22
      $region48: #{core_attention.1} parent=31 // pred_fallthru
        _
    $region32: #{core_attention.1} parent=5 // pred_fallthru
      _
    %p628 = scmp.le.s32.totalorder 2, %s13
    // Predicated region
    $region49: #{core_attention.1} parent=5 // pred_check
      %p629 = pneg %p628
    $region50: #{core_attention.1} parent=5 // pred_check_branch
      %631 = sbr.rel (%p629) target = $region52
    $region51: #{core_attention.1} parent=5 // pred_region
      %s632 = ssub.s32 %s13, 2
      // Predicated region
      $region53: #{core_attention.1} parent=51 // pred_check
        %p633 = pneg %p148
      $region54: #{core_attention.1} parent=51 // pred_check_branch
        %635 = sbr.rel (%p633) target = $region56
      $region55: #{core_attention.1} parent=51 // pred_region
        %s636 = sld [smem:[#allocation6 + %s25]]
        %s637 = smul.u32 2, %s24
        %p638 = scmp.lt.s32.totalorder %s637, 7
        %s639 = scalar_select %p638, %s637, 7
        %p640 = scmp.lt.s32.totalorder %s636, 0
        %s641 = scalar_select %p640, %s636, 0
        %s642 = sadd.s32 %s641, %s639
        %s643 = smul.addr %s642, 8
        %s644 = scalar_lea.vmem %s5, %s643
      $region56: #{core_attention.1} parent=51 // pred_fallthru
        _
    $region52: #{core_attention.1} parent=5 // pred_fallthru
      _
  $region6: #{core_attention.1} parent=0 // loop_footer
    %s17 = sadd.s32 1, %s13
  $region7: #{core_attention.1} parent=0 // loop_footer_branch
    %12 = sbr.rel target = $region3
  $region8: #{core_attention.1} parent=0 // loop_exit
    _

</llo_original>
